<compile_context>
chip_gen: v6e
topology: v6e:2x2x1
jax: 0.10.0
libtpu: 0.0.40
codegen_flags: <defaults>
</compile_context>

<pallas_src>
import jax
import jax.numpy as jnp
from jax.experimental import pallas as pl
from jax.experimental.pallas import tpu as pltpu  # noqa: F401  (kept for TPU-specific extensions)

# ----------------------------- config -----------------------------
BATCH = 2
SEQ = 8
HIDDEN = 32
VOCAB = 50
NUM_LAYERS = 3
TARGET_LAYER = 1          # hook on model.layers.1
MULTIPLIER = 5.0


# ------------------------ fused Pallas kernel ---------------------------
def _fused_forward_kernel(ids_ref, mask_ref, emb_ref, w_ref, cv_ref, o_ref):
    """Fully fused forward: embedding gather + synthetic decoder stack + hook.

    ids_ref : [M, 1]      int32 token ids
    mask_ref: [M, 1]      attention mask (0/1), broadcast over H
    emb_ref : [V, H]      embedding table (VMEM-resident)
    w_ref   : [L, H, H]   stacked per-layer weights (VMEM-resident)
    cv_ref  : [1, H]      cognitive vector
    o_ref   : [M, H]      hidden_states[-1]
    """
    M = ids_ref.shape[0]
    V = emb_ref.shape[0]

    # Embedding lookup as a one-hot matmul on the MXU (exact: one nonzero/row).
    vocab_iota = jax.lax.broadcasted_iota(jnp.int32, (M, V), 1)       # [M, V]
    one_hot = (ids_ref[...] == vocab_iota).astype(jnp.float32)        # VPU compare+select
    h = jnp.dot(one_hot, emb_ref[...], preferred_element_type=jnp.float32)  # [M, H] MXU

    # Mask padded positions (VPU, same tile — no extra HBM round trip).
    h = h * mask_ref[...]

    # Hoisted once: the hook's scaled broadcast operand (applied at exactly one layer).
    cv_add = MULTIPLIER * cv_ref[...]                                  # [1, H]

    # Static (compile-time-unrolled) layer loop: h stays resident on-chip.
    for layer_idx in range(NUM_LAYERS):
        w = w_ref[layer_idx]                                           # [H, H], static index
        y = jnp.dot(h, w, preferred_element_type=jnp.float32)          # MXU
        h = h + jnp.tanh(y)                                            # EUP + VPU (f32)
        if layer_idx == TARGET_LAYER:                                  # compile-time hook site
            # forward hook: hidden + multiplier * cognitive_vector
            h = h + cv_add                                             # VPU broadcast add

    # Single store of the final hidden states.
    o_ref[...] = h.astype(o_ref.dtype)


def _full_spec(shape):
    # Tiny shapes: one full-array block per operand (no grid), blocks are
    # full-extent so the (8,128) divisibility rule does not apply.
    return pl.BlockSpec(shape, lambda: tuple(0 for _ in shape))


def fused_forward(ids2d, mask2d, emb, w_stack, cv2d):
    """ids2d: [M,1] i32, mask2d: [M,1] f32, emb: [V,H] f32,
    w_stack: [L,H,H] f32, cv2d: [1,H] f32 -> [M,H] f32."""
    M = ids2d.shape[0]
    V, H = emb.shape
    L = w_stack.shape[0]
    return pl.pallas_call(
        _fused_forward_kernel,
        out_shape=jax.ShapeDtypeStruct((M, H), jnp.float32),
        in_specs=[
            _full_spec((M, 1)),
            _full_spec((M, 1)),
            _full_spec((V, H)),
            _full_spec((L, H, H)),
            _full_spec((1, H)),
        ],
        out_specs=_full_spec((M, H)),
    )(ids2d, mask2d, emb, w_stack, cv2d)


# --------------------- synthetic base model + wrapper ---------------------
def init_params(key):
    k_emb, k_cv, *k_layers = jax.random.split(key, 2 + NUM_LAYERS)
    params = {
        "embedding": jax.random.normal(k_emb, (VOCAB, HIDDEN), jnp.float32) * 0.02,
        # Stacked [L, H, H] so the fused kernel gets all weights in one VMEM slab.
        "layer_w": jnp.stack(
            [jax.random.normal(k, (HIDDEN, HIDDEN), jnp.float32) * 0.05 for k in k_layers]
        ),
        "cognitive_vector": jax.random.normal(k_cv, (HIDDEN,), jnp.float32),
    }
    return params


@jax.jit
def cognitive_layer_wrapper_forward(params, input_ids, attention_mask):
    """Mirrors CognitiveLayerWrapper.forward: run base model with the hook on
    layer TARGET_LAYER, return hidden_states[-1] as [B, S, H]."""
    B, S = input_ids.shape
    ids2d = input_ids.astype(jnp.int32).reshape(B * S, 1)              # [M, 1]
    mask2d = attention_mask.astype(jnp.float32).reshape(B * S, 1)      # [M, 1]
    cv2d = params["cognitive_vector"].astype(jnp.float32).reshape(1, HIDDEN)

    out2d = fused_forward(
        ids2d, mask2d, params["embedding"], params["layer_w"], cv2d
    )                                                                   # single fused kernel
    # hidden_states[-1]
    return out2d.reshape(B, S, HIDDEN)


def reference_forward(params, input_ids, attention_mask):
    """Pure-JAX reference for correctness check."""
    h = jnp.take(params["embedding"], input_ids, axis=0)
    h = h * attention_mask.astype(h.dtype)[:, :, None]
    for layer_idx in range(NUM_LAYERS):
        w = params["layer_w"][layer_idx]
        h = h + jnp.tanh(h @ w)
        if layer_idx == TARGET_LAYER:
            h = h + MULTIPLIER * params["cognitive_vector"][None, None, :]
    return h


# ------------------------------- main -------------------------------
if __name__ == "__main__":
    key = jax.random.PRNGKey(0)
    k_params, k_ids, k_mask = jax.random.split(key, 3)

    params = init_params(k_params)
    input_ids = jax.random.randint(k_ids, (BATCH, SEQ), 0, VOCAB, dtype=jnp.int32)
    attention_mask = jnp.ones((BATCH, SEQ), dtype=jnp.int32)

    out = cognitive_layer_wrapper_forward(params, input_ids, attention_mask)
    out = jax.block_until_ready(out)

    ref = reference_forward(params, input_ids, attention_mask)
    assert out.shape == (BATCH, SEQ, HIDDEN)
    assert jnp.allclose(out, ref, atol=1e-5, rtol=1e-5), "mismatch vs reference"

    # TODO(synk): the real base_model is an arbitrary HF decoder (attention, RoPE,
    # norms); only a synthetic residual-tanh stack is implemented here.
    print("KERNEL_OK")
</pallas_src>

<mosaic_0001>
module attributes {stable_mosaic.version = 11 : i64} {
  func.func @_fused_forward_kernel(%arg0: memref<16x1xi32, #tpu.memory_space<vmem>>, %arg1: memref<16x1xf32, #tpu.memory_space<vmem>>, %arg2: memref<50x32xf32, #tpu.memory_space<vmem>>, %arg3: memref<3x32x32xf32, #tpu.memory_space<vmem>>, %arg4: memref<1x32xf32, #tpu.memory_space<vmem>>, %arg5: memref<16x32xf32, #tpu.memory_space<vmem>>) attributes {dimension_semantics = [], scalar_prefetch = 0 : i64, scratch_operands = 0 : i64, tpu.core_type = #tpu.core_type<tc>} {
    %0 = tpu.iota {dimensions = array<i32: 1>} : vector<16x50xi32>
    %c0 = arith.constant 0 : index
    %c0_0 = arith.constant 0 : index
    %1 = vector.load %arg0[%c0, %c0_0] : memref<16x1xi32, #tpu.memory_space<vmem>>, vector<16x1xi32>
    %2 = vector.broadcast %1 : vector<16x1xi32> to vector<16x50xi32>
    %3 = arith.cmpi eq, %2, %0 : vector<16x50xi32>
    %4 = arith.extui %3 : vector<16x50xi1> to vector<16x50xi32>
    %5 = arith.sitofp %4 : vector<16x50xi32> to vector<16x50xf32>
    %c0_1 = arith.constant 0 : index
    %c0_2 = arith.constant 0 : index
    %6 = vector.load %arg2[%c0_1, %c0_2] : memref<50x32xf32, #tpu.memory_space<vmem>>, vector<50x32xf32>
    %cst = arith.constant dense<0.000000e+00> : vector<16x32xf32>
    %7 = tpu.matmul %5, %6, %cst {dimension_numbers = #tpu.dot_dimension_numbers<[1], [0], [0], [1], [0, 0, 1, 1], [], []>} : vector<16x50xf32>, vector<50x32xf32>, vector<16x32xf32> -> vector<16x32xf32>
    %c0_3 = arith.constant 0 : index
    %c0_4 = arith.constant 0 : index
    %8 = vector.load %arg1[%c0_3, %c0_4] : memref<16x1xf32, #tpu.memory_space<vmem>>, vector<16x1xf32>
    %9 = vector.broadcast %8 : vector<16x1xf32> to vector<16x32xf32>
    %10 = arith.mulf %7, %9 : vector<16x32xf32>
    %c0_5 = arith.constant 0 : index
    %c0_6 = arith.constant 0 : index
    %11 = vector.load %arg4[%c0_5, %c0_6] : memref<1x32xf32, #tpu.memory_space<vmem>>, vector<1x32xf32>
    %cst_7 = arith.constant 5.000000e+00 : f32
    %12 = vector.broadcast %cst_7 : f32 to vector<1x32xf32>
    %13 = arith.mulf %12, %11 : vector<1x32xf32>
    %c0_8 = arith.constant 0 : index
    %c0_9 = arith.constant 0 : index
    %c0_10 = arith.constant 0 : index
    %14 = vector.load %arg3[%c0_8, %c0_9, %c0_10] : memref<3x32x32xf32, #tpu.memory_space<vmem>>, vector<1x32x32xf32>
    %15 = vector.shape_cast %14 : vector<1x32x32xf32> to vector<32x32xf32>
    %cst_11 = arith.constant dense<0.000000e+00> : vector<16x32xf32>
    %16 = tpu.matmul %10, %15, %cst_11 {dimension_numbers = #tpu.dot_dimension_numbers<[1], [0], [0], [1], [0, 0, 1, 1], [], []>} : vector<16x32xf32>, vector<32x32xf32>, vector<16x32xf32> -> vector<16x32xf32>
    %17 = math.tanh %16 : vector<16x32xf32>
    %18 = arith.addf %10, %17 : vector<16x32xf32>
    %c1 = arith.constant 1 : index
    %c0_12 = arith.constant 0 : index
    %c0_13 = arith.constant 0 : index
    %19 = vector.load %arg3[%c1, %c0_12, %c0_13] : memref<3x32x32xf32, #tpu.memory_space<vmem>>, vector<1x32x32xf32>
    %20 = vector.shape_cast %19 : vector<1x32x32xf32> to vector<32x32xf32>
    %cst_14 = arith.constant dense<0.000000e+00> : vector<16x32xf32>
    %21 = tpu.matmul %18, %20, %cst_14 {dimension_numbers = #tpu.dot_dimension_numbers<[1], [0], [0], [1], [0, 0, 1, 1], [], []>} : vector<16x32xf32>, vector<32x32xf32>, vector<16x32xf32> -> vector<16x32xf32>
    %22 = math.tanh %21 : vector<16x32xf32>
    %23 = arith.addf %18, %22 : vector<16x32xf32>
    %24 = vector.broadcast %13 : vector<1x32xf32> to vector<16x32xf32>
    %25 = arith.addf %23, %24 : vector<16x32xf32>
    %c2 = arith.constant 2 : index
    %c0_15 = arith.constant 0 : index
    %c0_16 = arith.constant 0 : index
    %26 = vector.load %arg3[%c2, %c0_15, %c0_16] : memref<3x32x32xf32, #tpu.memory_space<vmem>>, vector<1x32x32xf32>
    %27 = vector.shape_cast %26 : vector<1x32x32xf32> to vector<32x32xf32>
    %cst_17 = arith.constant dense<0.000000e+00> : vector<16x32xf32>
    %28 = tpu.matmul %25, %27, %cst_17 {dimension_numbers = #tpu.dot_dimension_numbers<[1], [0], [0], [1], [0, 0, 1, 1], [], []>} : vector<16x32xf32>, vector<32x32xf32>, vector<16x32xf32> -> vector<16x32xf32>
    %29 = math.tanh %28 : vector<16x32xf32>
    %30 = arith.addf %25, %29 : vector<16x32xf32>
    %c0_18 = arith.constant 0 : index
    %c0_19 = arith.constant 0 : index
    %31 = vector.load %arg5[%c0_18, %c0_19] : memref<16x32xf32, #tpu.memory_space<vmem>>, vector<16x32xf32>
    tpu.vector_store %arg5[%c0_18, %c0_19], %30 {strides = array<i32>} : memref<16x32xf32, #tpu.memory_space<vmem>>, vector<16x32xf32>,
    return
  }
}

</mosaic_0001>

<llo_original>
// kernel: cognitive_layer_wrapper_forward.1
$region0: #{cognitive_layer_wrapper_forward.1}
  #allocation0 [shape = 'u32[]', space=smem, size = 0x4, offset = 0x4, fixed_abs, tag = 'smem constant byte address 0x4 - core index']
  #allocation1 [shape = 'u32[144,128]{1,0:T(1,128)}', space=vmem, size = 0x12000, scoped, tag = 'internal scratch']
  %s0 = inlined_call_operand.vmem [shape: s32[16,1], index: 0, kind: input, shape index: {}]
  %s1 = inlined_call_operand.vmem [shape: f32[16,1], index: 1, kind: input, shape index: {}]
  %s2 = inlined_call_operand.vmem [shape: f32[50,32], index: 2, kind: input, shape index: {}]
  %s3 = inlined_call_operand.vmem [shape: f32[3,32,32], index: 3, kind: input, shape index: {}]
  %s4 = inlined_call_operand.vmem [shape: f32[1,32], index: 4, kind: input, shape index: {}]
  %s5 = inlined_call_operand.hbm [shape: f32[16,32], index: 5, kind: output, shape index: {}]
  %s6 = sld [smem:[#allocation0]]
  $region30: #{cognitive_layer_wrapper_forward.1} parent=0
    _
  %s8 = ssub.s32 1, %s6
  %s9 = scalar_select 0, %s8, %s6
  $region1: #{cognitive_layer_wrapper_forward.1} parent=0
    #allocation2 [shape = 'u8[8192]{0}', space=vmem, size = 0x2000, scoped, tag = 'output window, operand 0, single buffered']
    #allocation3 [shape = 's32[1]{0}', space=sflag, size = 0x4, scoped, tag = 'scoped memory for cognitive_layer_wrapper_forward.1']
    %10 = vsyncpa [#allocation3], 0
    // Predicated region
    $region2: #{cognitive_layer_wrapper_forward.1} parent=1 // pred_check
      _
    $region3: #{cognitive_layer_wrapper_forward.1} parent=1 // pred_check_branch
      %12 = sbr.rel (0) target = $region5
    $region4: #{cognitive_layer_wrapper_forward.1} parent=1 // pred_region
      _
    $region5: #{cognitive_layer_wrapper_forward.1} parent=1 // pred_fallthru
      _
    // Predicated region
    $region6: #{cognitive_layer_wrapper_forward.1} parent=1 // pred_check
      _
    $region7: #{cognitive_layer_wrapper_forward.1} parent=1 // pred_check_branch
      %14 = sbr.rel (0) target = $region9
    $region8: #{cognitive_layer_wrapper_forward.1} parent=1 // pred_region
      _
    $region9: #{cognitive_layer_wrapper_forward.1} parent=1 // pred_fallthru
      _
    // Predicated region
    $region10: #{cognitive_layer_wrapper_forward.1} parent=1 // pred_check
      _
    $region11: #{cognitive_layer_wrapper_forward.1} parent=1 // pred_check_branch
      %16 = sbr.rel (0) target = $region13
    $region12: #{cognitive_layer_wrapper_forward.1} parent=1 // pred_region
      _
    $region13: #{cognitive_layer_wrapper_forward.1} parent=1 // pred_fallthru
      _
    // Predicated region
    $region14: #{cognitive_layer_wrapper_forward.1} parent=1 // pred_check
      _
    $region15: #{cognitive_layer_wrapper_forward.1} parent=1 // pred_check_branch
      %18 = sbr.rel (0) target = $region17
    $region16: #{cognitive_layer_wrapper_forward.1} parent=1 // pred_region
      _
    $region17: #{cognitive_layer_wrapper_forward.1} parent=1 // pred_fallthru
      _
    // Predicated region
    $region18: #{cognitive_layer_wrapper_forward.1} parent=1 // pred_check
      _
    $region19: #{cognitive_layer_wrapper_forward.1} parent=1 // pred_check_branch
      %20 = sbr.rel (0) target = $region21
    $region20: #{cognitive_layer_wrapper_forward.1} parent=1 // pred_region
      _
    $region21: #{cognitive_layer_wrapper_forward.1} parent=1 // pred_fallthru
      _
    %v21 = vlaneseq
    %v22 = vand.u32 %v21, 127
    %v23 = vld [vmem:[%s0] sm:$0xff]
    %v24 = vld [vmem:[%s0 + $0x8] sm:$0xff]
    %25 = vset.pattern.permute.xlu0 0
    %26 = vperm.xlu0 %25, %v23
    %v27 = vpop.permute.xlu0 %26
    %28 = vset.pattern.permute.xlu0 0
    %29 = vperm.xlu0 %28, %v24
    %v30 = vpop.permute.xlu0 %29
    %vm31 = vcmp.eq.s32.totalorder %v27, %v22
    %vm32 = vcmp.eq.s32.totalorder %v30, %v22
    %v33 = vsel %vm31, 1, 0
    %v34 = vsel %vm32, 1, 0
    %v35 = vcvt.s32.f32 %v33
    %v36 = vcvt.s32.f32 %v34
    %v37 = vld [vmem:[%s2] sm:$0xff]
    %v38 = vld [vmem:[%s2 + $0x8] sm:$0xff]
    %v39 = vld [vmem:[%s2 + $0x10] sm:$0xff]
    %v40 = vld [vmem:[%s2 + $0x18] sm:$0xff]
    %v41 = vld [vmem:[%s2 + $0x20] sm:$0xff]
    %v42 = vld [vmem:[%s2 + $0x28] sm:$0xff]
    %v43 = vld [vmem:[%s2 + $0x30] sm:$0x3]
    %vm44 = vcmask 408576
    %v46 = vsel %vm44, %v35, 0
    %v49 = vsel %vm44, %v36, 0
    %vm51 = vcmask 1041408
    %v53 = vsel %vm51, %v43, 0
    %55 = vmatprep.subr.mxu0 0.0
    %56 = vmatpush1.msra.mxu0 0.0
    %57 = vmatprep.subr.mxu0 0.0
    %58 = vmatpush1.msra.mxu0 0.0
    %59 = vmatprep.subr.mxu0 0.0
    %60 = vmatpush1.msra.mxu0 0.0
    %61 = vmatprep.subr.mxu0 0.0
    %62 = vmatpush1.msra.mxu0 0.0
    %63 = vmatprep.subr.mxu0 0.0
    %64 = vmatpush1.msra.mxu0 0.0
    %65 = vmatprep.subr.mxu0 0.0
    %66 = vmatpush1.msra.mxu0 0.0
    %67 = vmatprep.subr.mxu0 0.0
    %68 = vmatpush1.msra.mxu0 0.0
    %69 = vmatprep.subr.mxu0 0.0
    %70 = vmatpush1.msra.mxu0 0.0
    %71 = vmatprep.subr.mxu0 0.0
    %72 = vmatpush1.msra.mxu0 0.0
    %73 = vmatprep.subr.mxu0 0.0
    %74 = vmatpush1.msra.mxu0 %v53
    %75 = vmatprep.subr.mxu0 0.0
    %76 = vmatpush1.msra.mxu0 %v42
    %77 = vmatprep.subr.mxu0 0.0
    %78 = vmatpush1.msra.mxu0 %v41
    %79 = vmatprep.subr.mxu0 0.0
    %80 = vmatpush1.msra.mxu0 %v40
    %81 = vmatprep.subr.mxu0 0.0
    %82 = vmatpush1.msra.mxu0 %v39
    %83 = vmatprep.subr.mxu0 0.0
    %84 = vmatpush1.msra.mxu0 %v38
    %85 = vmatprep.subr.mxu0 0.0
    %86 = vmatpush1.msra.mxu0 %v37
    %87 = vmatprep.subr.mxu0 0.0
    %88 = vmatpush2.msra.mxu0 0.0
    %89 = vmatprep.subr.mxu0 0.0
    %90 = vmatpush2.msra.mxu0 0.0
    %91 = vmatprep.subr.mxu0 0.0
    %92 = vmatpush2.msra.mxu0 0.0
    %93 = vmatprep.subr.mxu0 0.0
    %94 = vmatpush2.msra.mxu0 0.0
    %95 = vmatprep.subr.mxu0 0.0
    %96 = vmatpush2.msra.mxu0 0.0
    %97 = vmatprep.subr.mxu0 0.0
    %98 = vmatpush2.msra.mxu0 0.0
    %99 = vmatprep.subr.mxu0 0.0
    %100 = vmatpush2.msra.mxu0 0.0
    %101 = vmatprep.subr.mxu0 0.0
    %102 = vmatpush2.msra.mxu0 0.0
    %103 = vmatprep.subr.mxu0 0.0
    %104 = vmatpush2.msra.mxu0 0.0
    %105 = vmatprep.subr.mxu0 0.0
    %106 = vmatpush2.msra.mxu0 0.0
    %107 = vmatprep.subr.mxu0 0.0
    %108 = vmatpush2.msra.mxu0 0.0
    %109 = vmatprep.subr.mxu0 0.0
    %110 = vmatpush2.msra.mxu0 0.0
    %111 = vmatprep.subr.mxu0 0.0
    %112 = vmatpush2.msra.mxu0 0.0
    %113 = vmatprep.subr.mxu0 0.0
    %114 = vmatpush2.msra.mxu0 0.0
    %115 = vmatprep.subr.mxu0 0.0
    %116 = vmatpush2.msra.mxu0 0.0
    %117 = vmatprep.subr.mxu0 0.0
    %118 = vmatpush2.msra.mxu0 0.0
    %119 = vmatprep.mubr.f32.mxu0 0.0
    %120 = vmatmul.mubr.f32.gmra.mxu0 %v46
    %v121 = vpop.f32.mrf.mxu0
    %v122 = vadd.f32 0.0, %v121
    %v123 = vpop.f32.mrf.mxu0
    %124 = vmatprep.mubr.f32.mxu0 0.0
    %125 = vmatmul.mubr.f32.gmra.mxu0 %v49
    %v126 = vpop.f32.mrf.mxu0
    %v127 = vadd.f32 0.0, %v126
    %v128 = vpop.f32.mrf.mxu0
    %129 = vdwg.mxu0
    %v130 = vld [vmem:[%s1] sm:$0xff]
    %v131 = vld [vmem:[%s1 + $0x8] sm:$0xff]
    %133 = vset.pattern.permute.xlu0 0
    %134 = vperm.xlu0 %133, %v130
    %v135 = vpop.permute.xlu0 %134
    %138 = vset.pattern.permute.xlu0 0
    %139 = vperm.xlu0 %138, %v131
    %v140 = vpop.permute.xlu0 %139
    %v142 = vmul.f32 %v122, %v135
    %v143 = vmul.f32 %v127, %v140
    %v144 = vld [vmem:[%s4] sm:$0x1]
    %v145 = vmul.f32 %v144, 5.0
    %v146 = vld [vmem:[%s3] sm:$0xff]
    %v147 = vld [vmem:[%s3 + $0x8] sm:$0xff]
    %v148 = vld [vmem:[%s3 + $0x10] sm:$0xff]
    %v149 = vld [vmem:[%s3 + $0x18] sm:$0xff]
    %vm150 = vcmask 261120
    %v152 = vsel %vm150, %v142, 0
    %v155 = vsel %vm150, %v143, 0
    %157 = vmatprep.subr.mxu0 0.0
    %158 = vmatpush1.msra.mxu0 0.0
    %159 = vmatprep.subr.mxu0 0.0
    %160 = vmatpush1.msra.mxu0 0.0
    %161 = vmatprep.subr.mxu0 0.0
    %162 = vmatpush1.msra.mxu0 0.0
    %163 = vmatprep.subr.mxu0 0.0
    %164 = vmatpush1.msra.mxu0 0.0
    %165 = vmatprep.subr.mxu0 0.0
    %166 = vmatpush1.msra.mxu0 0.0
    %167 = vmatprep.subr.mxu0 0.0
    %168 = vmatpush1.msra.mxu0 0.0
    %169 = vmatprep.subr.mxu0 0.0
    %170 = vmatpush1.msra.mxu0 0.0
    %171 = vmatprep.subr.mxu0 0.0
    %172 = vmatpush1.msra.mxu0 0.0
    %173 = vmatprep.subr.mxu0 0.0
    %174 = vmatpush1.msra.mxu0 0.0
    %175 = vmatprep.subr.mxu0 0.0
    %176 = vmatpush1.msra.mxu0 0.0
    %177 = vmatprep.subr.mxu0 0.0
    %178 = vmatpush1.msra.mxu0 0.0
    %179 = vmatprep.subr.mxu0 0.0
    %180 = vmatpush1.msra.mxu0 0.0
    %181 = vmatprep.subr.mxu0 0.0
    %182 = vmatpush1.msra.mxu0 %v149
    %183 = vmatprep.subr.mxu0 0.0
    %184 = vmatpush1.msra.mxu0 %v148
    %185 = vmatprep.subr.mxu0 0.0
    %186 = vmatpush1.msra.mxu0 %v147
    %187 = vmatprep.subr.mxu0 0.0
    %188 = vmatpush1.msra.mxu0 %v146
    %189 = vmatprep.subr.mxu0 0.0
    %190 = vmatpush2.msra.mxu0 0.0
    %191 = vmatprep.subr.mxu0 0.0
    %192 = vmatpush2.msra.mxu0 0.0
    %193 = vmatprep.subr.mxu0 0.0
    %194 = vmatpush2.msra.mxu0 0.0
    %195 = vmatprep.subr.mxu0 0.0
    %196 = vmatpush2.msra.mxu0 0.0
    %197 = vmatprep.subr.mxu0 0.0
    %198 = vmatpush2.msra.mxu0 0.0
    %199 = vmatprep.subr.mxu0 0.0
    %200 = vmatpush2.msra.mxu0 0.0
    %201 = vmatprep.subr.mxu0 0.0
    %202 = vmatpush2.msra.mxu0 0.0
    %203 = vmatprep.subr.mxu0 0.0
    %204 = vmatpush2.msra.mxu0 0.0
    %205 = vmatprep.subr.mxu0 0.0
    %206 = vmatpush2.msra.mxu0 0.0
    %207 = vmatprep.subr.mxu0 0.0
    %208 = vmatpush2.msra.mxu0 0.0
    %209 = vmatprep.subr.mxu0 0.0
    %210 = vmatpush2.msra.mxu0 0.0
    %211 = vmatprep.subr.mxu0 0.0
    %212 = vmatpush2.msra.mxu0 0.0
    %213 = vmatprep.subr.mxu0 0.0
    %214 = vmatpush2.msra.mxu0 0.0
    %215 = vmatprep.subr.mxu0 0.0
    %216 = vmatpush2.msra.mxu0 0.0
    %217 = vmatprep.subr.mxu0 0.0
    %218 = vmatpush2.msra.mxu0 0.0
    %219 = vmatprep.subr.mxu0 0.0
    %220 = vmatpush2.msra.mxu0 0.0
    %221 = vmatprep.mubr.f32.mxu0 0.0
    %222 = vmatmul.mubr.f32.gmra.mxu0 %v152
    %v223 = vpop.f32.mrf.mxu0
    %v224 = vadd.f32 0.0, %v223
    %v225 = vpop.f32.mrf.mxu0
    %226 = vmatprep.mubr.f32.mxu0 0.0
    %227 = vmatmul.mubr.f32.gmra.mxu0 %v155
    %v228 = vpop.f32.mrf.mxu0
    %v229 = vadd.f32 0.0, %v228
    %v230 = vpop.f32.mrf.mxu0
    %231 = vdwg.mxu0
    %v232 = vtanh.pop %v224
    %v233 = vtanh.pop %v229
    %v234 = vadd.f32 %v142, %v232
    %v235 = vadd.f32 %v143, %v233
    %s236 = scalar_lea.vmem %s3, 32
    %v237 = vld [vmem:[%s236] sm:$0xff]
    %v238 = vld [vmem:[%s236 + $0x8] sm:$0xff]
    %v239 = vld [vmem:[%s236 + $0x10] sm:$0xff]
    %v240 = vld [vmem:[%s236 + $0x18] sm:$0xff]
    %v242 = vsel %vm150, %v234, 0
    %v245 = vsel %vm150, %v235, 0
    %247 = vmatprep.subr.mxu0 0.0
    %248 = vmatpush1.msra.mxu0 0.0
    %249 = vmatprep.subr.mxu0 0.0
    %250 = vmatpush1.msra.mxu0 0.0
    %251 = vmatprep.subr.mxu0 0.0
    %252 = vmatpush1.msra.mxu0 0.0
    %253 = vmatprep.subr.mxu0 0.0
    %254 = vmatpush1.msra.mxu0 0.0
    %255 = vmatprep.subr.mxu0 0.0
    %256 = vmatpush1.msra.mxu0 0.0
    %257 = vmatprep.subr.mxu0 0.0
    %258 = vmatpush1.msra.mxu0 0.0
    %259 = vmatprep.subr.mxu0 0.0
    %260 = vmatpush1.msra.mxu0 0.0
    %261 = vmatprep.subr.mxu0 0.0
    %262 = vmatpush1.msra.mxu0 0.0
    %263 = vmatprep.subr.mxu0 0.0
    %264 = vmatpush1.msra.mxu0 0.0
    %265 = vmatprep.subr.mxu0 0.0
    %266 = vmatpush1.msra.mxu0 0.0
    %267 = vmatprep.subr.mxu0 0.0
    %268 = vmatpush1.msra.mxu0 0.0
    %269 = vmatprep.subr.mxu0 0.0
    %270 = vmatpush1.msra.mxu0 0.0
    %271 = vmatprep.subr.mxu0 0.0
    %272 = vmatpush1.msra.mxu0 %v240
    %273 = vmatprep.subr.mxu0 0.0
    %274 = vmatpush1.msra.mxu0 %v239
    %275 = vmatprep.subr.mxu0 0.0
    %276 = vmatpush1.msra.mxu0 %v238
    %277 = vmatprep.subr.mxu0 0.0
    %278 = vmatpush1.msra.mxu0 %v237
    %279 = vmatprep.subr.mxu0 0.0
    %280 = vmatpush2.msra.mxu0 0.0
    %281 = vmatprep.subr.mxu0 0.0
    %282 = vmatpush2.msra.mxu0 0.0
    %283 = vmatprep.subr.mxu0 0.0
    %284 = vmatpush2.msra.mxu0 0.0
    %285 = vmatprep.subr.mxu0 0.0
    %286 = vmatpush2.msra.mxu0 0.0
    %287 = vmatprep.subr.mxu0 0.0
    %288 = vmatpush2.msra.mxu0 0.0
    %289 = vmatprep.subr.mxu0 0.0
    %290 = vmatpush2.msra.mxu0 0.0
    %291 = vmatprep.subr.mxu0 0.0
    %292 = vmatpush2.msra.mxu0 0.0
    %293 = vmatprep.subr.mxu0 0.0
    %294 = vmatpush2.msra.mxu0 0.0
    %295 = vmatprep.subr.mxu0 0.0
    %296 = vmatpush2.msra.mxu0 0.0
    %297 = vmatprep.subr.mxu0 0.0
    %298 = vmatpush2.msra.mxu0 0.0
    %299 = vmatprep.subr.mxu0 0.0
    %300 = vmatpush2.msra.mxu0 0.0
    %301 = vmatprep.subr.mxu0 0.0
    %302 = vmatpush2.msra.mxu0 0.0
    %303 = vmatprep.subr.mxu0 0.0
    %304 = vmatpush2.msra.mxu0 0.0
    %305 = vmatprep.subr.mxu0 0.0
    %306 = vmatpush2.msra.mxu0 0.0
    %307 = vmatprep.subr.mxu0 0.0
    %308 = vmatpush2.msra.mxu0 0.0
    %309 = vmatprep.subr.mxu0 0.0
    %310 = vmatpush2.msra.mxu0 0.0
    %311 = vmatprep.mubr.f32.mxu0 0.0
    %312 = vmatmul.mubr.f32.gmra.mxu0 %v242
    %v313 = vpop.f32.mrf.mxu0
    %v314 = vadd.f32 0.0, %v313
    %v315 = vpop.f32.mrf.mxu0
    %316 = vmatprep.mubr.f32.mxu0 0.0
    %317 = vmatmul.mubr.f32.gmra.mxu0 %v245
    %v318 = vpop.f32.mrf.mxu0
    %v319 = vadd.f32 0.0, %v318
    %v320 = vpop.f32.mrf.mxu0
    %321 = vdwg.mxu0
    %v322 = vtanh.pop %v314
    %v323 = vtanh.pop %v319
    %v324 = vadd.f32 %v234, %v322
    %v325 = vadd.f32 %v235, %v323
    %v327 = vlaneseq
    %v328 = vshrl.u32 %v327, 7
    %v329 = vsub.s32 0, %v328
    %v330 = vrot.slane %v145, %v329
    %v332 = vadd.f32 %v324, %v330
    %v333 = vadd.f32 %v325, %v330
    %s334 = scalar_lea.vmem %s3, 64
    %v335 = vld [vmem:[%s334] sm:$0xff]
    %v336 = vld [vmem:[%s334 + $0x8] sm:$0xff]
    %v337 = vld [vmem:[%s334 + $0x10] sm:$0xff]
    %v338 = vld [vmem:[%s334 + $0x18] sm:$0xff]
    %v340 = vsel %vm150, %v332, 0
    %v343 = vsel %vm150, %v333, 0
    %345 = vmatprep.subr.mxu0 0.0
    %346 = vmatpush1.msra.mxu0 0.0
    %347 = vmatprep.subr.mxu0 0.0
    %348 = vmatpush1.msra.mxu0 0.0
    %349 = vmatprep.subr.mxu0 0.0
    %350 = vmatpush1.msra.mxu0 0.0
    %351 = vmatprep.subr.mxu0 0.0
    %352 = vmatpush1.msra.mxu0 0.0
    %353 = vmatprep.subr.mxu0 0.0
    %354 = vmatpush1.msra.mxu0 0.0
    %355 = vmatprep.subr.mxu0 0.0
    %356 = vmatpush1.msra.mxu0 0.0
    %357 = vmatprep.subr.mxu0 0.0
    %358 = vmatpush1.msra.mxu0 0.0
    %359 = vmatprep.subr.mxu0 0.0
    %360 = vmatpush1.msra.mxu0 0.0
    %361 = vmatprep.subr.mxu0 0.0
    %362 = vmatpush1.msra.mxu0 0.0
    %363 = vmatprep.subr.mxu0 0.0
    %364 = vmatpush1.msra.mxu0 0.0
    %365 = vmatprep.subr.mxu0 0.0
    %366 = vmatpush1.msra.mxu0 0.0
    %367 = vmatprep.subr.mxu0 0.0
    %368 = vmatpush1.msra.mxu0 0.0
    %369 = vmatprep.subr.mxu0 0.0
    %370 = vmatpush1.msra.mxu0 %v338
    %371 = vmatprep.subr.mxu0 0.0
    %372 = vmatpush1.msra.mxu0 %v337
    %373 = vmatprep.subr.mxu0 0.0
    %374 = vmatpush1.msra.mxu0 %v336
    %375 = vmatprep.subr.mxu0 0.0
    %376 = vmatpush1.msra.mxu0 %v335
    %377 = vmatprep.subr.mxu0 0.0
    %378 = vmatpush2.msra.mxu0 0.0
    %379 = vmatprep.subr.mxu0 0.0
    %380 = vmatpush2.msra.mxu0 0.0
    %381 = vmatprep.subr.mxu0 0.0
    %382 = vmatpush2.msra.mxu0 0.0
    %383 = vmatprep.subr.mxu0 0.0
    %384 = vmatpush2.msra.mxu0 0.0
    %385 = vmatprep.subr.mxu0 0.0
    %386 = vmatpush2.msra.mxu0 0.0
    %387 = vmatprep.subr.mxu0 0.0
    %388 = vmatpush2.msra.mxu0 0.0
    %389 = vmatprep.subr.mxu0 0.0
    %390 = vmatpush2.msra.mxu0 0.0
    %391 = vmatprep.subr.mxu0 0.0
    %392 = vmatpush2.msra.mxu0 0.0
    %393 = vmatprep.subr.mxu0 0.0
    %394 = vmatpush2.msra.mxu0 0.0
    %395 = vmatprep.subr.mxu0 0.0
    %396 = vmatpush2.msra.mxu0 0.0
    %397 = vmatprep.subr.mxu0 0.0
    %398 = vmatpush2.msra.mxu0 0.0
    %399 = vmatprep.subr.mxu0 0.0
    %400 = vmatpush2.msra.mxu0 0.0
    %401 = vmatprep.subr.mxu0 0.0
    %402 = vmatpush2.msra.mxu0 0.0
    %403 = vmatprep.subr.mxu0 0.0
    %404 = vmatpush2.msra.mxu0 0.0
    %405 = vmatprep.subr.mxu0 0.0
    %406 = vmatpush2.msra.mxu0 0.0
    %407 = vmatprep.subr.mxu0 0.0
    %408 = vmatpush2.msra.mxu0 0.0
    %409 = vmatprep.mubr.f32.mxu0 0.0
    %410 = vmatmul.mubr.f32.gmra.mxu0 %v340
    %v411 = vpop.f32.mrf.mxu0
    %v412 = vadd.f32 0.0, %v411
    %v413 = vpop.f32.mrf.mxu0
    %414 = vmatprep.mubr.f32.mxu0 0.0
    %415 = vmatmul.mubr.f32.gmra.mxu0 %v343
    %v416 = vpop.f32.mrf.mxu0
    %v417 = vadd.f32 0.0, %v416
    %v418 = vpop.f32.mrf.mxu0
    %419 = vdwg.mxu0
    %v420 = vtanh.pop %v412
    %v421 = vtanh.pop %v417
    %v422 = vadd.f32 %v332, %v420
    %v423 = vadd.f32 %v333, %v421
    %424 = vst.msk [vmem:[#allocation2] sm:$0xff] %vm150, %v422
    %425 = vst.msk [vmem:[#allocation2 + $0x8] sm:$0xff] %vm150, %v423
    // Predicated region
    $region22: #{cognitive_layer_wrapper_forward.1} parent=1 // pred_check
      _
    $region23: #{cognitive_layer_wrapper_forward.1} parent=1 // pred_check_branch
      %427 = sbr.rel (0) target = $region25
    $region24: #{cognitive_layer_wrapper_forward.1} parent=1 // pred_region
      %s429 = ssub.s32 256, 256
      %430 = vsyncadd [#allocation3], %s429
      %s431 = sshll.u32 [#allocation2], 4
      %s432 = int_to_ptr.vmem [resolvable:$true] %s431
      %437 = dma.vmem_to_hbm [thread:$0]  %s432, 256, %s5, [#allocation3], 128, 128, 8
    $region25: #{cognitive_layer_wrapper_forward.1} parent=1 // pred_fallthru
      _
    // Predicated region
    $region26: #{cognitive_layer_wrapper_forward.1} parent=1 // pred_check
      _
    $region27: #{cognitive_layer_wrapper_forward.1} parent=1 // pred_check_branch
      %439 = sbr.rel (0) target = $region29
    $region28: #{cognitive_layer_wrapper_forward.1} parent=1 // pred_region
      %440 = dma.done [#allocation3], 256
    $region29: #{cognitive_layer_wrapper_forward.1} parent=1 // pred_fallthru
      _
    %441 = vsyncpa [#allocation3], 1

</llo_original>
